<compile_context>
chip_gen: v6e
topology: v6e:2x2x1
jax: 0.10.0
libtpu: 0.0.40
codegen_flags: <defaults>
</compile_context>

<pallas_src>
import jax
import jax.numpy as jnp
from jax.experimental import pallas as pl
from jax.experimental.pallas import tpu as pltpu


def _mlp_kernel(xT_ref, w1T_ref, b1_ref, w2T_ref, b2_ref, oT_ref):
    """One batch-lane tile of the fused MLP, computed in transposed layout.

    xT:  (insize, TM)      f32  - batch on the lane axis
    w1T: (hidden, insize)  bf16 - VMEM-resident across grid steps
    b1:  (hidden, 1)       f32
    w2T: (outsize, hidden) bf16 - VMEM-resident
    b2:  (outsize, 1)      f32
    oT:  (outsize, TM)     f32  - lane-dense output (batch on lanes)
    """
    x_bf = xT_ref[...].astype(jnp.bfloat16)
    # Linear 1: MXU matmul (bf16 in, f32 accumulate), bias + ReLU in f32 (VPU).
    h = jnp.dot(w1T_ref[...], x_bf, preferred_element_type=jnp.float32)
    h = jnp.maximum(h + b1_ref[...], 0.0)
    # Linear 2.
    out = jnp.dot(w2T_ref[...], h.astype(jnp.bfloat16),
                  preferred_element_type=jnp.float32)
    oT_ref[...] = (out + b2_ref[...]).astype(oT_ref.dtype)


def neural_network_forward(x, w1, b1, w2, b2, *, tm=1024):
    """Fused MLP forward matching the PyTorch module.

    x:  (B, insize) f32
    w1: (insize, 128), b1: (128,), w2: (128, outsize), b2: (outsize,)
    Returns squeezed logits like `logits.squeeze()` in PyTorch.
    """
    B, insize = x.shape
    hidden = w1.shape[1]
    outsize = w2.shape[1]

    # Kernel-side parameter layout: transposed, bf16 weights, f32 column biases.
    w1_t = w1.T.astype(jnp.bfloat16)                 # (hidden, insize)
    w2_t = w2.T.astype(jnp.bfloat16)                 # (outsize, hidden)
    b1_c = b1.reshape(hidden, 1).astype(jnp.float32)
    b2_c = b2.reshape(outsize, 1).astype(jnp.float32)

    # Batch tiling: small batches -> one full-batch tile (block == full array
    # satisfies the (8,128) rule); large batches -> TM-wide lane tiles.
    if B <= tm:
        TM = B
        B_pad = B
        x_pad = x
    else:
        TM = tm                                       # multiple of 128
        B_pad = pl.cdiv(B, TM) * TM
        x_pad = jnp.pad(x, ((0, B_pad - B), (0, 0))) if B_pad != B else x
    x_t = x_pad.T                                     # (insize, B_pad)
    grid = (B_pad // TM,)

    itemsize = x.dtype.itemsize
    cost = pl.CostEstimate(
        flops=2 * B * (insize * hidden + hidden * outsize),
        transcendentals=0,
        bytes_accessed=(x.size * itemsize
                        + w1_t.size * 2 + w2_t.size * 2
                        + b1_c.size * 4 + b2_c.size * 4
                        + B * outsize * itemsize),
    )

    out_t = pl.pallas_call(
        _mlp_kernel,
        out_shape=jax.ShapeDtypeStruct((outsize, B_pad), x.dtype),
        grid=grid,
        in_specs=[
            pl.BlockSpec((insize, TM), lambda i: (0, i)),        # x batch tile
            pl.BlockSpec((hidden, insize), lambda i: (0, 0)),    # w1 (resident)
            pl.BlockSpec((hidden, 1), lambda i: (0, 0)),         # b1 (resident)
            pl.BlockSpec((outsize, hidden), lambda i: (0, 0)),   # w2 (resident)
            pl.BlockSpec((outsize, 1), lambda i: (0, 0)),        # b2 (resident)
        ],
        out_specs=pl.BlockSpec((outsize, TM), lambda i: (0, i)),
        compiler_params=pltpu.CompilerParams(
            dimension_semantics=("parallel",),       # shards batch tiles on v7x's 2 TCs
            vmem_limit_bytes=32 * 1024 * 1024,       # explicit, safe on v5e/v6e/v7x
        ),
        cost_estimate=cost,
    )(x_t, w1_t, b1_c, w2_t, b2_c)

    logits = out_t.T[:B]                             # back to (B, outsize)
    # PyTorch: logits.squeeze() removes all size-1 dims (incl. batch when B==1).
    return jnp.squeeze(logits)


if __name__ == "__main__":
    # Small shapes implied by the module: batch=2, insize=32, ndfa=4 -> outsize=4.
    B, insize, ndfa, hidden = 2, 32, 4, 128
    outsize = ndfa if ndfa > 2 else 1

    key = jax.random.PRNGKey(0)
    kx, kw1, kb1, kw2, kb2 = jax.random.split(key, 5)

    x = jax.random.normal(kx, (B, insize), dtype=jnp.float32)
    # Parameters kept as (in, out); PyTorch stores (out, in) - pure layout choice.
    w1 = jax.random.normal(kw1, (insize, hidden), dtype=jnp.float32) * 0.05
    b1 = jax.random.normal(kb1, (hidden,), dtype=jnp.float32) * 0.05
    w2 = jax.random.normal(kw2, (hidden, outsize), dtype=jnp.float32) * 0.05
    b2 = jax.random.normal(kb2, (outsize,), dtype=jnp.float32) * 0.05

    out = neural_network_forward(x, w1, b1, w2, b2)
    out = jax.block_until_ready(out)

    # Pure-JAX reference with the same bf16-in / f32-accumulate matmul numerics.
    xb = x.astype(jnp.bfloat16)
    w1b = w1.astype(jnp.bfloat16)
    w2b = w2.astype(jnp.bfloat16)
    h_ref = jnp.maximum(
        jnp.dot(xb, w1b, preferred_element_type=jnp.float32) + b1, 0.0)
    ref = jnp.squeeze(
        jnp.dot(h_ref.astype(jnp.bfloat16), w2b,
                preferred_element_type=jnp.float32) + b2)

    assert out.shape == ref.shape, (out.shape, ref.shape)
    assert jnp.allclose(out, ref, atol=1e-4, rtol=1e-4)

    print("KERNEL_OK")
</pallas_src>

<mosaic_0001>
module attributes {stable_mosaic.version = 11 : i64} {
  func.func @_mlp_kernel(%arg0: i32, %arg1: memref<32x2xf32, #tpu.memory_space<vmem>>, %arg2: memref<128x32xbf16, #tpu.memory_space<vmem>>, %arg3: memref<128x1xf32, #tpu.memory_space<vmem>>, %arg4: memref<4x128xbf16, #tpu.memory_space<vmem>>, %arg5: memref<4x1xf32, #tpu.memory_space<vmem>>, %arg6: memref<4x2xf32, #tpu.memory_space<vmem>>) attributes {dimension_semantics = [#tpu.dimension_semantics<parallel>], iteration_bounds = array<i64: 1>, scalar_prefetch = 0 : i64, scratch_operands = 0 : i64, tpu.core_type = #tpu.core_type<tc>, window_params = [{transform_indices = @transform_0, window_bounds = array<i64: 32, 2>}, {pipeline_mode = #tpu.pipeline_mode<synchronous>, transform_indices = @transform_1, window_bounds = array<i64: 128, 32>}, {pipeline_mode = #tpu.pipeline_mode<synchronous>, transform_indices = @transform_2, window_bounds = array<i64: 128, 1>}, {pipeline_mode = #tpu.pipeline_mode<synchronous>, transform_indices = @transform_3, window_bounds = array<i64: 4, 128>}, {pipeline_mode = #tpu.pipeline_mode<synchronous>, transform_indices = @transform_4, window_bounds = array<i64: 4, 1>}, {transform_indices = @transform_5, window_bounds = array<i64: 4, 2>}]} {
    %c0 = arith.constant 0 : index
    %c0_0 = arith.constant 0 : index
    %0 = vector.load %arg1[%c0, %c0_0] : memref<32x2xf32, #tpu.memory_space<vmem>>, vector<32x2xf32>
    %1 = arith.truncf %0 : vector<32x2xf32> to vector<32x2xbf16>
    %c0_1 = arith.constant 0 : index
    %c0_2 = arith.constant 0 : index
    %2 = vector.load %arg2[%c0_1, %c0_2] : memref<128x32xbf16, #tpu.memory_space<vmem>>, vector<128x32xbf16>
    %cst = arith.constant dense<0.000000e+00> : vector<128x2xf32>
    %3 = tpu.matmul %2, %1, %cst {dimension_numbers = #tpu.dot_dimension_numbers<[1], [0], [0], [1], [0, 0, 1, 1], [], []>} : vector<128x32xbf16>, vector<32x2xbf16>, vector<128x2xf32> -> vector<128x2xf32>
    %c0_3 = arith.constant 0 : index
    %c0_4 = arith.constant 0 : index
    %4 = vector.load %arg3[%c0_3, %c0_4] : memref<128x1xf32, #tpu.memory_space<vmem>>, vector<128x1xf32>
    %5 = vector.broadcast %4 : vector<128x1xf32> to vector<128x2xf32>
    %6 = arith.addf %3, %5 : vector<128x2xf32>
    %cst_5 = arith.constant 0.000000e+00 : f32
    %7 = vector.broadcast %cst_5 : f32 to vector<128x2xf32>
    %8 = arith.maximumf %6, %7 : vector<128x2xf32>
    %c0_6 = arith.constant 0 : index
    %c0_7 = arith.constant 0 : index
    %9 = vector.load %arg4[%c0_6, %c0_7] : memref<4x128xbf16, #tpu.memory_space<vmem>>, vector<4x128xbf16>
    %10 = arith.truncf %8 : vector<128x2xf32> to vector<128x2xbf16>
    %cst_8 = arith.constant dense<0.000000e+00> : vector<4x2xf32>
    %11 = tpu.matmul %9, %10, %cst_8 {dimension_numbers = #tpu.dot_dimension_numbers<[1], [0], [0], [1], [0, 0, 1, 1], [], []>} : vector<4x128xbf16>, vector<128x2xbf16>, vector<4x2xf32> -> vector<4x2xf32>
    %c0_9 = arith.constant 0 : index
    %c0_10 = arith.constant 0 : index
    %12 = vector.load %arg5[%c0_9, %c0_10] : memref<4x1xf32, #tpu.memory_space<vmem>>, vector<4x1xf32>
    %13 = vector.broadcast %12 : vector<4x1xf32> to vector<4x2xf32>
    %14 = arith.addf %11, %13 : vector<4x2xf32>
    %c0_11 = arith.constant 0 : index
    %c0_12 = arith.constant 0 : index
    %15 = vector.load %arg6[%c0_11, %c0_12] : memref<4x2xf32, #tpu.memory_space<vmem>>, vector<4x2xf32>
    tpu.vector_store %arg6[%c0_11, %c0_12], %14 {strides = array<i32>} : memref<4x2xf32, #tpu.memory_space<vmem>>, vector<4x2xf32>,
    return
  }
  func.func @transform_0(%arg0: i32) -> (i32, i32) {
    %c0_i32 = arith.constant 0 : i32
    %c0_i32_0 = arith.constant 0 : i32
    return %c0_i32, %arg0 : i32, i32
  }
  func.func @transform_1(%arg0: i32) -> (i32, i32) {
    %c0_i32 = arith.constant 0 : i32
    %c0_i32_0 = arith.constant 0 : i32
    %c0_i32_1 = arith.constant 0 : i32
    return %c0_i32, %c0_i32_0 : i32, i32
  }
  func.func @transform_2(%arg0: i32) -> (i32, i32) {
    %c0_i32 = arith.constant 0 : i32
    %c0_i32_0 = arith.constant 0 : i32
    %c0_i32_1 = arith.constant 0 : i32
    return %c0_i32, %c0_i32_0 : i32, i32
  }
  func.func @transform_3(%arg0: i32) -> (i32, i32) {
    %c0_i32 = arith.constant 0 : i32
    %c0_i32_0 = arith.constant 0 : i32
    %c0_i32_1 = arith.constant 0 : i32
    return %c0_i32, %c0_i32_0 : i32, i32
  }
  func.func @transform_4(%arg0: i32) -> (i32, i32) {
    %c0_i32 = arith.constant 0 : i32
    %c0_i32_0 = arith.constant 0 : i32
    %c0_i32_1 = arith.constant 0 : i32
    return %c0_i32, %c0_i32_0 : i32, i32
  }
  func.func @transform_5(%arg0: i32) -> (i32, i32) {
    %c0_i32 = arith.constant 0 : i32
    %c0_i32_0 = arith.constant 0 : i32
    return %c0_i32, %arg0 : i32, i32
  }
}

</mosaic_0001>

<llo_original>
// kernel: tpu_custom_call.1
$region0: #{tpu_custom_call.1}
  #allocation0 [shape = 'u32[]', space=smem, size = 0x4, offset = 0x4, fixed_abs, tag = 'smem constant byte address 0x4 - core index']
  #allocation1 [shape = 'u32[144,128]{1,0:T(1,128)}', space=vmem, size = 0x12000, scoped, tag = 'internal scratch']
  %s0 = inlined_call_operand.vmem [shape: f32[32,2], index: 0, kind: input, shape index: {}]
  %s1 = inlined_call_operand.vmem [shape: bf16[128,32], index: 1, kind: input, shape index: {}]
  %s2 = inlined_call_operand.vmem [shape: f32[128,1], index: 2, kind: input, shape index: {}]
  %s3 = inlined_call_operand.vmem [shape: bf16[4,128], index: 3, kind: input, shape index: {}]
  %s4 = inlined_call_operand.vmem [shape: f32[4,1], index: 4, kind: input, shape index: {}]
  %s5 = inlined_call_operand.vmem [shape: f32[4,2], index: 5, kind: output, shape index: {}]
  %s6 = sld [smem:[#allocation0]]
  $region30: #{tpu_custom_call.1} parent=0
    _
  %s8 = ssub.s32 1, %s6
  %s9 = scalar_select 0, %s8, %s6
  // Predicated region
  $region2: #{tpu_custom_call.1} parent=0 // pred_check
    _
  $region3: #{tpu_custom_call.1} parent=0 // pred_check_branch
    %11 = sbr.rel (0) target = $region5
  $region4: #{tpu_custom_call.1} parent=0 // pred_region
    _
  $region5: #{tpu_custom_call.1} parent=0 // pred_fallthru
    _
  // Predicated region
  $region6: #{tpu_custom_call.1} parent=0 // pred_check
    _
  $region7: #{tpu_custom_call.1} parent=0 // pred_check_branch
    %13 = sbr.rel (0) target = $region9
  $region8: #{tpu_custom_call.1} parent=0 // pred_region
    _
  $region9: #{tpu_custom_call.1} parent=0 // pred_fallthru
    _
  // Predicated region
  $region10: #{tpu_custom_call.1} parent=0 // pred_check
    _
  $region11: #{tpu_custom_call.1} parent=0 // pred_check_branch
    %15 = sbr.rel (0) target = $region13
  $region12: #{tpu_custom_call.1} parent=0 // pred_region
    _
  $region13: #{tpu_custom_call.1} parent=0 // pred_fallthru
    _
  // Predicated region
  $region14: #{tpu_custom_call.1} parent=0 // pred_check
    _
  $region15: #{tpu_custom_call.1} parent=0 // pred_check_branch
    %17 = sbr.rel (0) target = $region17
  $region16: #{tpu_custom_call.1} parent=0 // pred_region
    _
  $region17: #{tpu_custom_call.1} parent=0 // pred_fallthru
    _
  // Predicated region
  $region18: #{tpu_custom_call.1} parent=0 // pred_check
    _
  $region19: #{tpu_custom_call.1} parent=0 // pred_check_branch
    %19 = sbr.rel (0) target = $region21
  $region20: #{tpu_custom_call.1} parent=0 // pred_region
    _
  $region21: #{tpu_custom_call.1} parent=0 // pred_fallthru
    _
  %v21 = vld [vmem:[%s0] sm:$0xff]
  %v22 = vld [vmem:[%s0 + $0x8] sm:$0xff]
  %v23 = vld [vmem:[%s0 + $0x10] sm:$0xff]
  %v24 = vld [vmem:[%s0 + $0x18] sm:$0xff]
  %v25 = vpack.c.bf16 %v22, %v21
  %v26 = vpack.c.bf16 %v24, %v23
  %v27 = vld [vmem:[%s1] sm:$0xf]
  %v28 = vld [vmem:[%s1 + $0x4] sm:$0xf]
  %v29 = vld [vmem:[%s1 + $0x8] sm:$0xf]
  %v30 = vld [vmem:[%s1 + $0xc] sm:$0xf]
  %v31 = vld [vmem:[%s1 + $0x10] sm:$0xf]
  %v32 = vld [vmem:[%s1 + $0x14] sm:$0xf]
  %v33 = vld [vmem:[%s1 + $0x18] sm:$0xf]
  %v34 = vld [vmem:[%s1 + $0x1c] sm:$0xf]
  %v35 = vld [vmem:[%s1 + $0x20] sm:$0xf]
  %v36 = vld [vmem:[%s1 + $0x24] sm:$0xf]
  %v37 = vld [vmem:[%s1 + $0x28] sm:$0xf]
  %v38 = vld [vmem:[%s1 + $0x2c] sm:$0xf]
  %v39 = vld [vmem:[%s1 + $0x30] sm:$0xf]
  %v40 = vld [vmem:[%s1 + $0x34] sm:$0xf]
  %v41 = vld [vmem:[%s1 + $0x38] sm:$0xf]
  %v42 = vld [vmem:[%s1 + $0x3c] sm:$0xf]
  %v43 = vld [vmem:[%s2] sm:$0xff]
  %v44 = vld [vmem:[%s2 + $0x8] sm:$0xff]
  %v45 = vld [vmem:[%s2 + $0x10] sm:$0xff]
  %v46 = vld [vmem:[%s2 + $0x18] sm:$0xff]
  %v47 = vld [vmem:[%s2 + $0x20] sm:$0xff]
  %v48 = vld [vmem:[%s2 + $0x28] sm:$0xff]
  %v49 = vld [vmem:[%s2 + $0x30] sm:$0xff]
  %v50 = vld [vmem:[%s2 + $0x38] sm:$0xff]
  %v51 = vld [vmem:[%s2 + $0x40] sm:$0xff]
  %v52 = vld [vmem:[%s2 + $0x48] sm:$0xff]
  %v53 = vld [vmem:[%s2 + $0x50] sm:$0xff]
  %v54 = vld [vmem:[%s2 + $0x58] sm:$0xff]
  %v55 = vld [vmem:[%s2 + $0x60] sm:$0xff]
  %v56 = vld [vmem:[%s2 + $0x68] sm:$0xff]
  %v57 = vld [vmem:[%s2 + $0x70] sm:$0xff]
  %v58 = vld [vmem:[%s2 + $0x78] sm:$0xff]
  %60 = vset.pattern.permute.xlu0 0
  %61 = vperm.xlu0 %60, %v43
  %v62 = vpop.permute.xlu0 %61
  %65 = vset.pattern.permute.xlu0 0
  %66 = vperm.xlu0 %65, %v44
  %v67 = vpop.permute.xlu0 %66
  %70 = vset.pattern.permute.xlu0 0
  %71 = vperm.xlu0 %70, %v45
  %v72 = vpop.permute.xlu0 %71
  %75 = vset.pattern.permute.xlu0 0
  %76 = vperm.xlu0 %75, %v46
  %v77 = vpop.permute.xlu0 %76
  %80 = vset.pattern.permute.xlu0 0
  %81 = vperm.xlu0 %80, %v47
  %v82 = vpop.permute.xlu0 %81
  %85 = vset.pattern.permute.xlu0 0
  %86 = vperm.xlu0 %85, %v48
  %v87 = vpop.permute.xlu0 %86
  %90 = vset.pattern.permute.xlu0 0
  %91 = vperm.xlu0 %90, %v49
  %v92 = vpop.permute.xlu0 %91
  %95 = vset.pattern.permute.xlu0 0
  %96 = vperm.xlu0 %95, %v50
  %v97 = vpop.permute.xlu0 %96
  %100 = vset.pattern.permute.xlu0 0
  %101 = vperm.xlu0 %100, %v51
  %v102 = vpop.permute.xlu0 %101
  %105 = vset.pattern.permute.xlu0 0
  %106 = vperm.xlu0 %105, %v52
  %v107 = vpop.permute.xlu0 %106
  %110 = vset.pattern.permute.xlu0 0
  %111 = vperm.xlu0 %110, %v53
  %v112 = vpop.permute.xlu0 %111
  %115 = vset.pattern.permute.xlu0 0
  %116 = vperm.xlu0 %115, %v54
  %v117 = vpop.permute.xlu0 %116
  %120 = vset.pattern.permute.xlu0 0
  %121 = vperm.xlu0 %120, %v55
  %v122 = vpop.permute.xlu0 %121
  %125 = vset.pattern.permute.xlu0 0
  %126 = vperm.xlu0 %125, %v56
  %v127 = vpop.permute.xlu0 %126
  %130 = vset.pattern.permute.xlu0 0
  %131 = vperm.xlu0 %130, %v57
  %v132 = vpop.permute.xlu0 %131
  %135 = vset.pattern.permute.xlu0 0
  %136 = vperm.xlu0 %135, %v58
  %v137 = vpop.permute.xlu0 %136
  %v155 = vunpack.c.l.b16 %v27
  %v156 = vunpack.c.l.b16 %v28
  %v157 = vunpack.c.l.b16 %v29
  %v158 = vunpack.c.l.b16 %v30
  %v159 = vunpack.c.l.b16 %v31
  %v160 = vunpack.c.l.b16 %v32
  %v161 = vunpack.c.l.b16 %v33
  %v162 = vunpack.c.l.b16 %v34
  %v163 = vunpack.c.l.b16 %v35
  %v164 = vunpack.c.l.b16 %v36
  %v165 = vunpack.c.l.b16 %v37
  %v166 = vunpack.c.l.b16 %v38
  %v167 = vunpack.c.l.b16 %v39
  %v168 = vunpack.c.l.b16 %v40
  %v169 = vunpack.c.l.b16 %v41
  %v170 = vunpack.c.l.b16 %v42
  %v171 = vpack.c.b16 %v156, %v155
  %v172 = vpack.c.b16 %v158, %v157
  %v173 = vpack.c.b16 %v160, %v159
  %v174 = vpack.c.b16 %v162, %v161
  %v175 = vpack.c.b16 %v164, %v163
  %v176 = vpack.c.b16 %v166, %v165
  %v177 = vpack.c.b16 %v168, %v167
  %v178 = vpack.c.b16 %v170, %v169
  %vm179 = vcmask 261120
  %v181 = vsel %vm179, %v171, 0
  %v184 = vsel %vm179, %v172, 0
  %v187 = vsel %vm179, %v173, 0
  %v190 = vsel %vm179, %v174, 0
  %v193 = vsel %vm179, %v175, 0
  %v196 = vsel %vm179, %v176, 0
  %v199 = vsel %vm179, %v177, 0
  %v202 = vsel %vm179, %v178, 0
  %204 = vmatprep.subr.bf16.mxu0 0
  %205 = vmatpush1.bf16.msra.mxu0 0
  %206 = vmatprep.subr.bf16.mxu0 0
  %207 = vmatpush1.bf16.msra.mxu0 0
  %208 = vmatprep.subr.bf16.mxu0 0
  %209 = vmatpush1.bf16.msra.mxu0 0
  %210 = vmatprep.subr.bf16.mxu0 0
  %211 = vmatpush1.bf16.msra.mxu0 0
  %212 = vmatprep.subr.bf16.mxu0 0
  %213 = vmatpush1.bf16.msra.mxu0 0
  %214 = vmatprep.subr.bf16.mxu0 0
  %215 = vmatpush1.bf16.msra.mxu0 0
  %216 = vmatprep.subr.bf16.mxu0 0
  %217 = vmatpush1.bf16.msra.mxu0 %v26
  %218 = vmatprep.subr.bf16.mxu0 0
  %219 = vmatpush1.bf16.msra.mxu0 %v25
  %220 = vmatprep.subr.bf16.mxu0 0
  %221 = vmatpush2.bf16.msra.mxu0 0
  %222 = vmatprep.subr.bf16.mxu0 0
  %223 = vmatpush2.bf16.msra.mxu0 0
  %224 = vmatprep.subr.bf16.mxu0 0
  %225 = vmatpush2.bf16.msra.mxu0 0
  %226 = vmatprep.subr.bf16.mxu0 0
  %227 = vmatpush2.bf16.msra.mxu0 0
  %228 = vmatprep.subr.bf16.mxu0 0
  %229 = vmatpush2.bf16.msra.mxu0 0
  %230 = vmatprep.subr.bf16.mxu0 0
  %231 = vmatpush2.bf16.msra.mxu0 0
  %232 = vmatprep.subr.bf16.mxu0 0
  %233 = vmatpush2.bf16.msra.mxu0 0
  %234 = vmatprep.subr.bf16.mxu0 0
  %235 = vmatpush2.bf16.msra.mxu0 0
  %236 = vmatprep.mubr.bf16.mxu0 0
  %237 = vmatmul.mubr.bf16.gmra.mxu0 %v181
  %v238 = vpop.f32.mrf.mxu0
  %v239 = vadd.f32 %v62, %v238
  %v240 = vpop.f32.mrf.mxu0
  %v241 = vpop.f32.mrf.mxu0
  %v242 = vadd.f32 %v67, %v241
  %v243 = vpop.f32.mrf.mxu0
  %244 = vmatprep.mubr.bf16.mxu0 0
  %245 = vmatmul.mubr.bf16.gmra.mxu0 %v184
  %v246 = vpop.f32.mrf.mxu0
  %v247 = vadd.f32 %v72, %v246
  %v248 = vpop.f32.mrf.mxu0
  %v249 = vpop.f32.mrf.mxu0
  %v250 = vadd.f32 %v77, %v249
  %v251 = vpop.f32.mrf.mxu0
  %252 = vmatprep.mubr.bf16.mxu0 0
  %253 = vmatmul.mubr.bf16.gmra.mxu0 %v187
  %v254 = vpop.f32.mrf.mxu0
  %v255 = vadd.f32 %v82, %v254
  %v256 = vpop.f32.mrf.mxu0
  %v257 = vpop.f32.mrf.mxu0
  %v258 = vadd.f32 %v87, %v257
  %v259 = vpop.f32.mrf.mxu0
  %260 = vmatprep.mubr.bf16.mxu0 0
  %261 = vmatmul.mubr.bf16.gmra.mxu0 %v190
  %v262 = vpop.f32.mrf.mxu0
  %v263 = vadd.f32 %v92, %v262
  %v264 = vpop.f32.mrf.mxu0
  %v265 = vpop.f32.mrf.mxu0
  %v266 = vadd.f32 %v97, %v265
  %v267 = vpop.f32.mrf.mxu0
  %268 = vmatprep.mubr.bf16.mxu0 0
  %269 = vmatmul.mubr.bf16.gmra.mxu0 %v193
  %v270 = vpop.f32.mrf.mxu0
  %v271 = vadd.f32 %v102, %v270
  %v272 = vpop.f32.mrf.mxu0
  %v273 = vpop.f32.mrf.mxu0
  %v274 = vadd.f32 %v107, %v273
  %v275 = vpop.f32.mrf.mxu0
  %276 = vmatprep.mubr.bf16.mxu0 0
  %277 = vmatmul.mubr.bf16.gmra.mxu0 %v196
  %v278 = vpop.f32.mrf.mxu0
  %v279 = vadd.f32 %v112, %v278
  %v280 = vpop.f32.mrf.mxu0
  %v281 = vpop.f32.mrf.mxu0
  %v282 = vadd.f32 %v117, %v281
  %v283 = vpop.f32.mrf.mxu0
  %284 = vmatprep.mubr.bf16.mxu0 0
  %285 = vmatmul.mubr.bf16.gmra.mxu0 %v199
  %v286 = vpop.f32.mrf.mxu0
  %v287 = vadd.f32 %v122, %v286
  %v288 = vpop.f32.mrf.mxu0
  %v289 = vpop.f32.mrf.mxu0
  %v290 = vadd.f32 %v127, %v289
  %v291 = vpop.f32.mrf.mxu0
  %292 = vmatprep.mubr.bf16.mxu0 0
  %293 = vmatmul.mubr.bf16.gmra.mxu0 %v202
  %v294 = vpop.f32.mrf.mxu0
  %v295 = vadd.f32 %v132, %v294
  %v296 = vpop.f32.mrf.mxu0
  %v297 = vpop.f32.mrf.mxu0
  %v298 = vadd.f32 %v137, %v297
  %v299 = vpop.f32.mrf.mxu0
  %300 = vdwg.mxu0
  %v301 = vmax.f32 %v239, 0.0
  %v302 = vmax.f32 %v242, 0.0
  %v303 = vmax.f32 %v247, 0.0
  %v304 = vmax.f32 %v250, 0.0
  %v305 = vmax.f32 %v255, 0.0
  %v306 = vmax.f32 %v258, 0.0
  %v307 = vmax.f32 %v263, 0.0
  %v308 = vmax.f32 %v266, 0.0
  %v309 = vmax.f32 %v271, 0.0
  %v310 = vmax.f32 %v274, 0.0
  %v311 = vmax.f32 %v279, 0.0
  %v312 = vmax.f32 %v282, 0.0
  %v313 = vmax.f32 %v287, 0.0
  %v314 = vmax.f32 %v290, 0.0
  %v315 = vmax.f32 %v295, 0.0
  %v316 = vmax.f32 %v298, 0.0
  %v317 = vld [vmem:[%s3] sm:$0x3]
  %v318 = vpack.c.bf16 %v302, %v301
  %v319 = vpack.c.bf16 %v304, %v303
  %v320 = vpack.c.bf16 %v306, %v305
  %v321 = vpack.c.bf16 %v308, %v307
  %v322 = vpack.c.bf16 %v310, %v309
  %v323 = vpack.c.bf16 %v312, %v311
  %v324 = vpack.c.bf16 %v314, %v313
  %v325 = vpack.c.bf16 %v316, %v315
  %v326 = vld [vmem:[%s4] sm:$0xf]
  %328 = vset.pattern.permute.xlu0 0
  %329 = vperm.xlu0 %328, %v326
  %v330 = vpop.permute.xlu0 %329
  %332 = vmatprep.subr.bf16.mxu0 0
  %333 = vmatpush1.bf16.msra.mxu0 %v325
  %334 = vmatprep.subr.bf16.mxu0 0
  %335 = vmatpush1.bf16.msra.mxu0 %v324
  %336 = vmatprep.subr.bf16.mxu0 0
  %337 = vmatpush1.bf16.msra.mxu0 %v323
  %338 = vmatprep.subr.bf16.mxu0 0
  %339 = vmatpush1.bf16.msra.mxu0 %v322
  %340 = vmatprep.subr.bf16.mxu0 0
  %341 = vmatpush1.bf16.msra.mxu0 %v321
  %342 = vmatprep.subr.bf16.mxu0 0
  %343 = vmatpush1.bf16.msra.mxu0 %v320
  %344 = vmatprep.subr.bf16.mxu0 0
  %345 = vmatpush1.bf16.msra.mxu0 %v319
  %346 = vmatprep.subr.bf16.mxu0 0
  %347 = vmatpush1.bf16.msra.mxu0 %v318
  %348 = vmatprep.subr.bf16.mxu0 0
  %349 = vmatpush2.bf16.msra.mxu0 0
  %350 = vmatprep.subr.bf16.mxu0 0
  %351 = vmatpush2.bf16.msra.mxu0 0
  %352 = vmatprep.subr.bf16.mxu0 0
  %353 = vmatpush2.bf16.msra.mxu0 0
  %354 = vmatprep.subr.bf16.mxu0 0
  %355 = vmatpush2.bf16.msra.mxu0 0
  %356 = vmatprep.subr.bf16.mxu0 0
  %357 = vmatpush2.bf16.msra.mxu0 0
  %358 = vmatprep.subr.bf16.mxu0 0
  %359 = vmatpush2.bf16.msra.mxu0 0
  %360 = vmatprep.subr.bf16.mxu0 0
  %361 = vmatpush2.bf16.msra.mxu0 0
  %362 = vmatprep.subr.bf16.mxu0 0
  %363 = vmatpush2.bf16.msra.mxu0 0
  %364 = vmatprep.mubr.bf16.mxu0 0
  %365 = vmatmul.mubr.bf16.gmra.mxu0 %v317
  %v366 = vpop.f32.mrf.mxu0
  %v367 = vadd.f32 %v330, %v366
  %v368 = vpop.f32.mrf.mxu0
  %v369 = vpop.f32.mrf.mxu0
  %v370 = vpop.f32.mrf.mxu0
  %371 = vdwg.mxu0
  %vm372 = vcmask 11264
  %373 = vst.msk [vmem:[%s5] sm:$0xf] %vm372, %v367
  // Predicated region
  $region22: #{tpu_custom_call.1} parent=0 // pred_check
    _
  $region23: #{tpu_custom_call.1} parent=0 // pred_check_branch
    %375 = sbr.rel (0) target = $region25
  $region24: #{tpu_custom_call.1} parent=0 // pred_region
    _
  $region25: #{tpu_custom_call.1} parent=0 // pred_fallthru
    _
  // Predicated region
  $region26: #{tpu_custom_call.1} parent=0 // pred_check
    _
  $region27: #{tpu_custom_call.1} parent=0 // pred_check_branch
    %377 = sbr.rel (0) target = $region29
  $region28: #{tpu_custom_call.1} parent=0 // pred_region
    _
  $region29: #{tpu_custom_call.1} parent=0 // pred_fallthru
    _

</llo_original>
